<compile_context>
chip_gen: v6e
topology: v6e:2x2x1
jax: 0.10.0
libtpu: 0.0.40
codegen_flags: <defaults>
</compile_context>

<pallas_src>
import functools
import math

import jax
import jax.numpy as jnp
from jax import lax
from jax.experimental import pallas as pl
from jax.experimental.pallas import tpu as pltpu


def _sphere_product_kernel(flags_ref, scale_ref, labels_ref, xnorm_ref,
                           winv_ref, x_ref, w_ref, out_ref, *scratch,
                           m, tc, n_col_tiles, n_k):
    # --- everything grid-dependent / scalar is computed at the TOP LEVEL ---
    # (pl.program_id has no lowering inside cond branches on the CPU/interpret
    #  fallback path, and scalar flags must be outside the pl.when bodies.)
    i = pl.program_id(0)
    j = pl.program_id(1)
    col_start = j * tc

    # Per-(i, j) "this output tile contains a target column" flag (SMEM scalar).
    has_tgt = flags_ref[i * n_col_tiles + j] != 0
    no_tgt = jnp.logical_not(has_tgt)

    # MXU: raw (un-normalized) x @ W^T partial product for this tile, f32 acc.
    # W is streamed in its native (C, D) layout; contract dim 1 of both.
    partial = lax.dot_general(
        x_ref[...], w_ref[...], (((1,), (1,)), ((), ())),
        preferred_element_type=jnp.float32)

    def _cos_and_norm(raw):
        xn = xnorm_ref[...]                               # (tb, 1) ||x||, f32
        inv_x = 1.0 / jnp.maximum(xn, 1e-12)              # F.normalize eps
        cos_t = jnp.clip(raw * inv_x * winv_ref[...], -1.0, 1.0)
        return cos_t, xn

    def _fast(raw):
        # No target column in this tile: output is just cos_theta * ||x||.
        cos_t, xn = _cos_and_norm(raw)
        return (cos_t * xn).astype(out_ref.dtype)

    def _margin(raw):
        cos_t, xn = _cos_and_norm(raw)

        # cos(m*theta) = T_m(cos_theta)  (same polynomials as module's mlambda)
        if m == 0:
            cos_mt = jnp.ones_like(cos_t)
        elif m == 1:
            cos_mt = cos_t
        elif m == 2:
            cos_mt = 2.0 * cos_t * cos_t - 1.0
        elif m == 3:
            cos_mt = (4.0 * cos_t * cos_t - 3.0) * cos_t
        elif m == 4:
            c2 = cos_t * cos_t
            cos_mt = (8.0 * c2 - 8.0) * c2 + 1.0
        elif m == 5:
            c2 = cos_t * cos_t
            cos_mt = ((16.0 * c2 - 20.0) * c2 + 5.0) * cos_t
        else:
            raise ValueError("m must be in 0..5 (module's mlambda table)")

        # k = floor(m*arccos(cos)/pi) without transcendentals:
        #   theta >= b*pi/m  <=>  cos_theta <= cos(b*pi/m)  (arccos decreasing)
        kf = jnp.zeros_like(cos_t)
        sign = jnp.ones_like(cos_t)
        for b in range(1, m + 1):
            crossed = cos_t <= math.cos(b * math.pi / m)
            kf = kf + jnp.where(crossed, 1.0, 0.0)
            sign = jnp.where(crossed, -sign, sign)
        phi = sign * cos_mt - 2.0 * kf

        # one-hot(label) via the global column index of this (i, j) tile.
        col = col_start + lax.broadcasted_iota(jnp.int32, cos_t.shape, 1)
        is_tgt = col == labels_ref[...]                   # (tb, tc) bool
        scale = scale_ref[0]                              # 1 / (1 + lambda)
        out = jnp.where(is_tgt, (phi - cos_t) * scale + cos_t, cos_t)
        return (out * xn).astype(out_ref.dtype)

    if n_k == 1:
        # Single reduction step: no accumulator scratch, no init, write once.
        @pl.when(no_tgt)
        def _():
            out_ref[...] = _fast(partial)

        @pl.when(has_tgt)
        def _():
            out_ref[...] = _margin(partial)
    else:
        (acc_ref,) = scratch
        k_step = pl.program_id(2)
        is_last = k_step == n_k - 1

        @pl.when(k_step == 0)
        def _():
            acc_ref[...] = jnp.zeros_like(acc_ref)

        acc_ref[...] += partial

        @pl.when(jnp.logical_and(is_last, no_tgt))
        def _():
            out_ref[...] = _fast(acc_ref[...])

        @pl.when(jnp.logical_and(is_last, has_tgt))
        def _():
            out_ref[...] = _margin(acc_ref[...])


def sphere_product(x, weight, labels, *, m=4, iter_=1, base=1000.0, gamma=0.12,
                   power=1, lambda_min=5.0, tb=512, tc=1024, tk=512,
                   operand_dtype=jnp.bfloat16, out_dtype=jnp.float32):
    """Forward pass of SphereProduct. x: (B, D), weight: (C, D), labels: (B,).
    Returns (B, C) in `out_dtype` (f32 by default; bf16 halves writeback)."""
    B, D = x.shape
    C, D2 = weight.shape
    assert D == D2
    assert labels.shape == (B,)

    # lambda annealing -> runtime scalar (no kernel recompile as iter_ changes,
    # and works with a traced iteration counter too).
    iter_f = jnp.asarray(iter_, dtype=jnp.float32)
    lamb = jnp.maximum(lambda_min, base * (1.0 + gamma * iter_f) ** (-float(power)))
    inv_one_plus_lamb = jnp.asarray(1.0 / (1.0 + lamb),
                                    dtype=jnp.float32).reshape((1,))

    xf = x.astype(jnp.float32)
    wf = weight.astype(jnp.float32)

    # Cheap O(B*D + C*D) norm reductions in f32; the normalization itself is
    # applied inside the kernel epilogue (no normalized x / W / W^T in HBM).
    x_norm = jnp.sqrt(jnp.sum(xf * xf, axis=1, keepdims=True))          # (B, 1)
    w_inv_norm = (1.0 / jnp.maximum(
        jnp.sqrt(jnp.sum(wf * wf, axis=1)), 1e-12)).reshape(1, C)       # (1, C)

    # bf16 operands feed the MXU at full rate and halve streamed HBM bytes.
    x_op = xf.astype(operand_dtype)
    w_op = wf.astype(operand_dtype)

    labels = labels.astype(jnp.int32)
    labels2d = labels.reshape(B, 1)

    tb = min(tb, B)
    tc = min(tc, C)
    tk = min(tk, D)
    assert B % tb == 0 and C % tc == 0 and D % tk == 0, "shapes must tile evenly"
    assert tb % 8 == 0 or tb == B
    assert (tc % 128 == 0 or tc == C) and (tc % 8 == 0 or tc == C)
    assert tk % 128 == 0 or tk == D

    n_row_tiles, n_col_tiles, n_k = B // tb, C // tc, D // tk
    grid = (n_row_tiles, n_col_tiles, n_k)

    # Per-(row-tile, col-tile) "contains a target column" bitmap -> SMEM, so
    # tiles without a label skip the whole margin epilogue.
    tile_flags = jnp.zeros((n_row_tiles * n_col_tiles,), jnp.int32).at[
        (jnp.arange(B, dtype=jnp.int32) // tb) * n_col_tiles + labels // tc
    ].set(1)

    kernel = functools.partial(_sphere_product_kernel, m=int(m), tc=tc,
                               n_col_tiles=n_col_tiles, n_k=n_k)

    scratch_shapes = [] if n_k == 1 else [pltpu.VMEM((tb, tc), jnp.float32)]

    return pl.pallas_call(
        kernel,
        out_shape=jax.ShapeDtypeStruct((B, C), out_dtype),
        grid_spec=pltpu.PrefetchScalarGridSpec(
            num_scalar_prefetch=0,
            grid=grid,
            in_specs=[
                pl.BlockSpec(memory_space=pltpu.MemorySpace.SMEM),   # tile flags
                pl.BlockSpec(memory_space=pltpu.MemorySpace.SMEM),   # 1/(1+lamb)
                pl.BlockSpec((tb, 1), lambda i, j, k: (i, 0)),       # labels
                pl.BlockSpec((tb, 1), lambda i, j, k: (i, 0)),       # ||x||
                pl.BlockSpec((1, tc), lambda i, j, k: (0, j)),       # 1/||w||
                pl.BlockSpec((tb, tk), lambda i, j, k: (i, k)),      # raw x (bf16)
                pl.BlockSpec((tc, tk), lambda i, j, k: (j, k)),      # raw W (bf16)
            ],
            out_specs=pl.BlockSpec((tb, tc), lambda i, j, k: (i, j)),
            scratch_shapes=scratch_shapes,
        ),
        compiler_params=pltpu.CompilerParams(
            dimension_semantics=("parallel", "parallel", "arbitrary")),
    )(tile_flags, inv_one_plus_lamb, labels2d, x_norm, w_inv_norm, x_op, w_op)


def _reference(x, weight, labels, *, m=4, iter_=1, base=1000.0, gamma=0.12,
               power=1, lambda_min=5.0):
    """Pure-JAX replica of the PyTorch forward (f32) for checking."""
    lamb = max(lambda_min, base * (1.0 + gamma * iter_) ** (-power))
    x = x.astype(jnp.float32)
    w = weight.astype(jnp.float32)
    x_norm = jnp.sqrt(jnp.sum(x * x, axis=1))                             # (B,)
    w_norm = jnp.sqrt(jnp.sum(w * w, axis=1, keepdims=True))
    cos_theta = (x / jnp.maximum(x_norm, 1e-12)[:, None]) @ (
        w / jnp.maximum(w_norm, 1e-12)).T
    cos_theta = jnp.clip(cos_theta, -1.0, 1.0)
    mlambda = [lambda c: c ** 0, lambda c: c, lambda c: 2 * c ** 2 - 1,
               lambda c: 4 * c ** 3 - 3 * c, lambda c: 8 * c ** 4 - 8 * c ** 2 + 1,
               lambda c: 16 * c ** 5 - 20 * c ** 3 + 5 * c]
    cos_m_theta = mlambda[m](cos_theta)
    theta = jnp.arccos(cos_theta)
    k = jnp.floor(m * theta / 3.14159265)
    sign = 1.0 - 2.0 * (k % 2.0)
    phi_theta = sign * cos_m_theta - 2.0 * k
    one_hot = jax.nn.one_hot(labels, w.shape[0], dtype=cos_theta.dtype)
    out = one_hot * (phi_theta - cos_theta) / (1.0 + lamb) + cos_theta
    return out * x_norm[:, None]


if __name__ == "__main__":
    # Small deterministic shapes consistent with the module (B x in_features
    # against an (out_features x in_features) weight).
    B, D, C = 16, 256, 512
    m_param, iter_param = 4, 1

    key = jax.random.PRNGKey(0)
    k_x, k_w, k_l = jax.random.split(key, 3)

    x = jax.random.normal(k_x, (B, D), dtype=jnp.float32)
    bound = math.sqrt(6.0 / (D + C))               # xavier_uniform-style init
    weight = jax.random.uniform(k_w, (C, D), dtype=jnp.float32,
                                minval=-bound, maxval=bound)
    labels = jax.random.randint(k_l, (B,), 0, C, dtype=jnp.int32)

    # Pre-round operands to bf16 so the bf16-MXU kernel and the f32 reference
    # see identical effective values (bf16*bf16 products are exact in f32).
    x_q = x.astype(jnp.bfloat16).astype(jnp.float32)
    w_q = weight.astype(jnp.bfloat16).astype(jnp.float32)

    ref = _reference(x_q, w_q, labels, m=m_param, iter_=iter_param)

    # 1) default tiles -> single k-step path (no accumulator scratch).
    out1 = jax.block_until_ready(
        sphere_product(x_q, w_q, labels, m=m_param, iter_=iter_param))
    # 2) small explicit tiles -> multi-tile / multi-k accumulate path.
    out2 = jax.block_until_ready(
        sphere_product(x_q, w_q, labels, m=m_param, iter_=iter_param,
                       tb=8, tc=128, tk=128))

    for out in (out1, out2):
        assert out.shape == (B, C) and out.dtype == jnp.float32
        err = float(jnp.max(jnp.abs(out - ref)))
        assert jnp.allclose(out, ref, atol=2e-3, rtol=2e-3), f"max abs err {err}"

    print("KERNEL_OK")
</pallas_src>

<mosaic_0001>
module attributes {stable_mosaic.version = 11 : i64} {
  func.func @_sphere_product_kernel(%arg0: i32, %arg1: i32, %arg2: i32, %arg3: memref<1xi32, #tpu.memory_space<smem>>, %arg4: memref<1xf32, #tpu.memory_space<smem>>, %arg5: memref<16x1xi32, #tpu.memory_space<vmem>>, %arg6: memref<16x1xf32, #tpu.memory_space<vmem>>, %arg7: memref<1x512xf32, #tpu.memory_space<vmem>>, %arg8: memref<16x256xbf16, #tpu.memory_space<vmem>>, %arg9: memref<512x256xbf16, #tpu.memory_space<vmem>>, %arg10: memref<16x512xf32, #tpu.memory_space<vmem>>) attributes {dimension_semantics = [#tpu.dimension_semantics<parallel>, #tpu.dimension_semantics<parallel>, #tpu.dimension_semantics<arbitrary>], iteration_bounds = array<i64: 1, 1, 1>, scalar_prefetch = 0 : i64, scratch_operands = 0 : i64, tpu.core_type = #tpu.core_type<tc>, window_params = [{transform_indices = @transform_0, window_bounds = array<i64: 1>}, {transform_indices = @transform_1, window_bounds = array<i64: 1>}, {transform_indices = @transform_2, window_bounds = array<i64: 16, 1>}, {transform_indices = @transform_3, window_bounds = array<i64: 16, 1>}, {transform_indices = @transform_4, window_bounds = array<i64: 1, 512>}, {transform_indices = @transform_5, window_bounds = array<i64: 16, 256>}, {transform_indices = @transform_6, window_bounds = array<i64: 512, 256>}, {transform_indices = @transform_7, window_bounds = array<i64: 16, 512>}]} {
    %c512_i32 = arith.constant 512 : i32
    %0 = arith.muli %arg1, %c512_i32 : i32
    %c1_i32 = arith.constant 1 : i32
    %1 = arith.muli %arg0, %c1_i32 : i32
    %2 = arith.addi %1, %arg1 : i32
    %3 = arith.index_cast %2 : i32 to index
    %4 = memref.load %arg3[%3] : memref<1xi32, #tpu.memory_space<smem>>
    %c0_i32 = arith.constant 0 : i32
    %5 = arith.cmpi ne, %4, %c0_i32 : i32
    %true = arith.constant true
    %6 = arith.xori %5, %true : i1
    %c0 = arith.constant 0 : index
    %c0_0 = arith.constant 0 : index
    %7 = vector.load %arg8[%c0, %c0_0] : memref<16x256xbf16, #tpu.memory_space<vmem>>, vector<16x256xbf16>
    %c0_1 = arith.constant 0 : index
    %c0_2 = arith.constant 0 : index
    %8 = vector.load %arg9[%c0_1, %c0_2] : memref<512x256xbf16, #tpu.memory_space<vmem>>, vector<512x256xbf16>
    %cst = arith.constant dense<0.000000e+00> : vector<16x512xf32>
    %9 = tpu.matmul %7, %8, %cst {dimension_numbers = #tpu.dot_dimension_numbers<[1], [1], [0], [0], [0, 0, 1, 0], [], []>} : vector<16x256xbf16>, vector<512x256xbf16>, vector<16x512xf32> -> vector<16x512xf32>
    %10 = arith.extui %6 : i1 to i32
    %c0_i32_3 = arith.constant 0 : i32
    %11 = arith.cmpi ne, %10, %c0_i32_3 : i32
    scf.if %11 {
      %c0_5 = arith.constant 0 : index
      %c0_6 = arith.constant 0 : index
      %14 = vector.load %arg6[%c0_5, %c0_6] : memref<16x1xf32, #tpu.memory_space<vmem>>, vector<16x1xf32>
      %cst_7 = arith.constant 9.99999996E-13 : f32
      %15 = vector.broadcast %cst_7 : f32 to vector<16x1xf32>
      %16 = arith.maximumf %14, %15 : vector<16x1xf32>
      %cst_8 = arith.constant 1.000000e+00 : f32
      %17 = vector.broadcast %cst_8 : f32 to vector<16x1xf32>
      %18 = arith.divf %17, %16 : vector<16x1xf32>
      %19 = vector.broadcast %18 : vector<16x1xf32> to vector<16x512xf32>
      %20 = arith.mulf %9, %19 : vector<16x512xf32>
      %c0_9 = arith.constant 0 : index
      %c0_10 = arith.constant 0 : index
      %21 = vector.load %arg7[%c0_9, %c0_10] : memref<1x512xf32, #tpu.memory_space<vmem>>, vector<1x512xf32>
      %22 = vector.broadcast %21 : vector<1x512xf32> to vector<16x512xf32>
      %23 = arith.mulf %20, %22 : vector<16x512xf32>
      %cst_11 = arith.constant -1.000000e+00 : f32
      %cst_12 = arith.constant 1.000000e+00 : f32
      %24 = vector.broadcast %cst_11 : f32 to vector<16x512xf32>
      %25 = arith.maximumf %24, %23 : vector<16x512xf32>
      %26 = vector.broadcast %cst_12 : f32 to vector<16x512xf32>
      %27 = arith.minimumf %26, %25 : vector<16x512xf32>
      %28 = vector.broadcast %14 : vector<16x1xf32> to vector<16x512xf32>
      %29 = arith.mulf %27, %28 : vector<16x512xf32>
      %c0_13 = arith.constant 0 : index
      %c0_14 = arith.constant 0 : index
      %30 = vector.load %arg10[%c0_13, %c0_14] : memref<16x512xf32, #tpu.memory_space<vmem>>, vector<16x512xf32>
      tpu.vector_store %arg10[%c0_13, %c0_14], %29 {strides = array<i32>} : memref<16x512xf32, #tpu.memory_space<vmem>>, vector<16x512xf32>,
    } else {
    }
    %12 = arith.extui %5 : i1 to i32
    %c0_i32_4 = arith.constant 0 : i32
    %13 = arith.cmpi ne, %12, %c0_i32_4 : i32
    scf.if %13 {
      %c0_5 = arith.constant 0 : index
      %c0_6 = arith.constant 0 : index
      %14 = vector.load %arg6[%c0_5, %c0_6] : memref<16x1xf32, #tpu.memory_space<vmem>>, vector<16x1xf32>
      %cst_7 = arith.constant 9.99999996E-13 : f32
      %15 = vector.broadcast %cst_7 : f32 to vector<16x1xf32>
      %16 = arith.maximumf %14, %15 : vector<16x1xf32>
      %cst_8 = arith.constant 1.000000e+00 : f32
      %17 = vector.broadcast %cst_8 : f32 to vector<16x1xf32>
      %18 = arith.divf %17, %16 : vector<16x1xf32>
      %19 = vector.broadcast %18 : vector<16x1xf32> to vector<16x512xf32>
      %20 = arith.mulf %9, %19 : vector<16x512xf32>
      %c0_9 = arith.constant 0 : index
      %c0_10 = arith.constant 0 : index
      %21 = vector.load %arg7[%c0_9, %c0_10] : memref<1x512xf32, #tpu.memory_space<vmem>>, vector<1x512xf32>
      %22 = vector.broadcast %21 : vector<1x512xf32> to vector<16x512xf32>
      %23 = arith.mulf %20, %22 : vector<16x512xf32>
      %cst_11 = arith.constant -1.000000e+00 : f32
      %cst_12 = arith.constant 1.000000e+00 : f32
      %24 = vector.broadcast %cst_11 : f32 to vector<16x512xf32>
      %25 = arith.maximumf %24, %23 : vector<16x512xf32>
      %26 = vector.broadcast %cst_12 : f32 to vector<16x512xf32>
      %27 = arith.minimumf %26, %25 : vector<16x512xf32>
      %28 = arith.mulf %27, %27 : vector<16x512xf32>
      %cst_13 = arith.constant 8.000000e+00 : f32
      %29 = vector.broadcast %cst_13 : f32 to vector<16x512xf32>
      %30 = arith.mulf %29, %28 : vector<16x512xf32>
      %cst_14 = arith.constant 8.000000e+00 : f32
      %31 = vector.broadcast %cst_14 : f32 to vector<16x512xf32>
      %32 = arith.subf %30, %31 : vector<16x512xf32>
      %33 = arith.mulf %32, %28 : vector<16x512xf32>
      %cst_15 = arith.constant 1.000000e+00 : f32
      %34 = vector.broadcast %cst_15 : f32 to vector<16x512xf32>
      %35 = arith.addf %33, %34 : vector<16x512xf32>
      %cst_16 = arith.constant 0.000000e+00 : f32
      %36 = vector.broadcast %cst_16 : f32 to vector<16x512xf32>
      %cst_17 = arith.constant 1.000000e+00 : f32
      %37 = vector.broadcast %cst_17 : f32 to vector<16x512xf32>
      %cst_18 = arith.constant 0.707106769 : f32
      %38 = vector.broadcast %cst_18 : f32 to vector<16x512xf32>
      %39 = arith.cmpf ole, %27, %38 : vector<16x512xf32>
      %cst_19 = arith.constant 1.000000e+00 : f32
      %cst_20 = arith.constant 0.000000e+00 : f32
      %40 = vector.broadcast %cst_19 : f32 to vector<16x512xf32>
      %41 = vector.broadcast %cst_20 : f32 to vector<16x512xf32>
      %42 = arith.select %39, %40, %41 : vector<16x512xi1>, vector<16x512xf32>
      %43 = arith.addf %36, %42 : vector<16x512xf32>
      %cst_21 = arith.constant 0.000000e+00 : f32
      %44 = vector.broadcast %cst_21 : f32 to vector<16x512xf32>
      %45 = arith.subf %44, %37 : vector<16x512xf32>
      %46 = arith.select %39, %45, %37 : vector<16x512xi1>, vector<16x512xf32>
      %cst_22 = arith.constant 6.12323426E-17 : f32
      %47 = vector.broadcast %cst_22 : f32 to vector<16x512xf32>
      %48 = arith.cmpf ole, %27, %47 : vector<16x512xf32>
      %cst_23 = arith.constant 1.000000e+00 : f32
      %cst_24 = arith.constant 0.000000e+00 : f32
      %49 = vector.broadcast %cst_23 : f32 to vector<16x512xf32>
      %50 = vector.broadcast %cst_24 : f32 to vector<16x512xf32>
      %51 = arith.select %48, %49, %50 : vector<16x512xi1>, vector<16x512xf32>
      %52 = arith.addf %43, %51 : vector<16x512xf32>
      %cst_25 = arith.constant 0.000000e+00 : f32
      %53 = vector.broadcast %cst_25 : f32 to vector<16x512xf32>
      %54 = arith.subf %53, %46 : vector<16x512xf32>
      %55 = arith.select %48, %54, %46 : vector<16x512xi1>, vector<16x512xf32>
      %cst_26 = arith.constant -0.707106769 : f32
      %56 = vector.broadcast %cst_26 : f32 to vector<16x512xf32>
      %57 = arith.cmpf ole, %27, %56 : vector<16x512xf32>
      %cst_27 = arith.constant 1.000000e+00 : f32
      %cst_28 = arith.constant 0.000000e+00 : f32
      %58 = vector.broadcast %cst_27 : f32 to vector<16x512xf32>
      %59 = vector.broadcast %cst_28 : f32 to vector<16x512xf32>
      %60 = arith.select %57, %58, %59 : vector<16x512xi1>, vector<16x512xf32>
      %61 = arith.addf %52, %60 : vector<16x512xf32>
      %cst_29 = arith.constant 0.000000e+00 : f32
      %62 = vector.broadcast %cst_29 : f32 to vector<16x512xf32>
      %63 = arith.subf %62, %55 : vector<16x512xf32>
      %64 = arith.select %57, %63, %55 : vector<16x512xi1>, vector<16x512xf32>
      %cst_30 = arith.constant -1.000000e+00 : f32
      %65 = vector.broadcast %cst_30 : f32 to vector<16x512xf32>
      %66 = arith.cmpf ole, %27, %65 : vector<16x512xf32>
      %cst_31 = arith.constant 1.000000e+00 : f32
      %cst_32 = arith.constant 0.000000e+00 : f32
      %67 = vector.broadcast %cst_31 : f32 to vector<16x512xf32>
      %68 = vector.broadcast %cst_32 : f32 to vector<16x512xf32>
      %69 = arith.select %66, %67, %68 : vector<16x512xi1>, vector<16x512xf32>
      %70 = arith.addf %61, %69 : vector<16x512xf32>
      %cst_33 = arith.constant 0.000000e+00 : f32
      %71 = vector.broadcast %cst_33 : f32 to vector<16x512xf32>
      %72 = arith.subf %71, %64 : vector<16x512xf32>
      %73 = arith.select %66, %72, %64 : vector<16x512xi1>, vector<16x512xf32>
      %74 = arith.mulf %73, %35 : vector<16x512xf32>
      %cst_34 = arith.constant 2.000000e+00 : f32
      %75 = vector.broadcast %cst_34 : f32 to vector<16x512xf32>
      %76 = arith.mulf %75, %70 : vector<16x512xf32>
      %77 = arith.subf %74, %76 : vector<16x512xf32>
      %78 = tpu.iota {dimensions = array<i32: 1>} : vector<16x512xi32>
      %79 = vector.broadcast %0 : i32 to vector<16x512xi32>
      %80 = arith.addi %79, %78 : vector<16x512xi32>
      %c0_35 = arith.constant 0 : index
      %c0_36 = arith.constant 0 : index
      %81 = vector.load %arg5[%c0_35, %c0_36] : memref<16x1xi32, #tpu.memory_space<vmem>>, vector<16x1xi32>
      %82 = vector.broadcast %81 : vector<16x1xi32> to vector<16x512xi32>
      %83 = arith.cmpi eq, %80, %82 : vector<16x512xi32>
      %c0_37 = arith.constant 0 : index
      %84 = memref.load %arg4[%c0_37] : memref<1xf32, #tpu.memory_space<smem>>
      %85 = arith.subf %77, %27 : vector<16x512xf32>
      %86 = vector.broadcast %84 : f32 to vector<16x512xf32>
      %87 = arith.mulf %85, %86 : vector<16x512xf32>
      %88 = arith.addf %87, %27 : vector<16x512xf32>
      %89 = arith.select %83, %88, %27 : vector<16x512xi1>, vector<16x512xf32>
      %90 = vector.broadcast %14 : vector<16x1xf32> to vector<16x512xf32>
      %91 = arith.mulf %89, %90 : vector<16x512xf32>
      %c0_38 = arith.constant 0 : index
      %c0_39 = arith.constant 0 : index
      %92 = vector.load %arg10[%c0_38, %c0_39] : memref<16x512xf32, #tpu.memory_space<vmem>>, vector<16x512xf32>
      tpu.vector_store %arg10[%c0_38, %c0_39], %91 {strides = array<i32>} : memref<16x512xf32, #tpu.memory_space<vmem>>, vector<16x512xf32>,
    } else {
    }
    return
  }
  func.func @transform_0(%arg0: i32, %arg1: i32, %arg2: i32) -> i32 {
    %c0_i32 = arith.constant 0 : i32
    %c0_i32_0 = arith.constant 0 : i32
    return %c0_i32 : i32
  }
  func.func @transform_1(%arg0: i32, %arg1: i32, %arg2: i32) -> i32 {
    %c0_i32 = arith.constant 0 : i32
    %c0_i32_0 = arith.constant 0 : i32
    return %c0_i32 : i32
  }
  func.func @transform_2(%arg0: i32, %arg1: i32, %arg2: i32) -> (i32, i32) {
    %c0_i32 = arith.constant 0 : i32
    %c0_i32_0 = arith.constant 0 : i32
    return %arg0, %c0_i32 : i32, i32
  }
  func.func @transform_3(%arg0: i32, %arg1: i32, %arg2: i32) -> (i32, i32) {
    %c0_i32 = arith.constant 0 : i32
    %c0_i32_0 = arith.constant 0 : i32
    return %arg0, %c0_i32 : i32, i32
  }
  func.func @transform_4(%arg0: i32, %arg1: i32, %arg2: i32) -> (i32, i32) {
    %c0_i32 = arith.constant 0 : i32
    %c0_i32_0 = arith.constant 0 : i32
    return %c0_i32, %arg1 : i32, i32
  }
  func.func @transform_5(%arg0: i32, %arg1: i32, %arg2: i32) -> (i32, i32) {
    %c0_i32 = arith.constant 0 : i32
    return %arg0, %arg2 : i32, i32
  }
  func.func @transform_6(%arg0: i32, %arg1: i32, %arg2: i32) -> (i32, i32) {
    %c0_i32 = arith.constant 0 : i32
    return %arg1, %arg2 : i32, i32
  }
  func.func @transform_7(%arg0: i32, %arg1: i32, %arg2: i32) -> (i32, i32) {
    %c0_i32 = arith.constant 0 : i32
    return %arg0, %arg1 : i32, i32
  }
}

</mosaic_0001>

<llo_original>
// kernel: tpu_custom_call.1
$region0: #{tpu_custom_call.1}
  #allocation0 [shape = 'u32[]', space=smem, size = 0x4, offset = 0x4, fixed_abs, tag = 'smem constant byte address 0x4 - core index']
  #allocation1 [shape = 'u32[144,128]{1,0:T(1,128)}', space=vmem, size = 0x12000, scoped, tag = 'internal scratch']
  #allocation2 [shape = 's32[1]{0:T(128)S(6)}', space=smem, size = 0x200, scoped, tag = 'scoped memory for tpu_custom_call.1']
  #allocation3 [shape = 'f32[1]{0:T(128)S(6)}', space=smem, size = 0x200, scoped, tag = 'scoped memory for tpu_custom_call.1']
  %s0 = inlined_call_operand.<no memory space> [shape: s32[1], index: 0, kind: input, shape index: {}]
  %s1 = inlined_call_operand.<no memory space> [shape: f32[1], index: 1, kind: input, shape index: {}]
  %s2 = inlined_call_operand.vmem [shape: s32[16,1], index: 2, kind: input, shape index: {}]
  %s3 = inlined_call_operand.vmem [shape: f32[16,1], index: 3, kind: input, shape index: {}]
  %s4 = inlined_call_operand.vmem [shape: f32[1,512], index: 4, kind: input, shape index: {}]
  %s5 = inlined_call_operand.vmem [shape: bf16[16,256], index: 5, kind: input, shape index: {}]
  %s6 = inlined_call_operand.hbm [shape: bf16[512,256], index: 6, kind: input, shape index: {}]
  %s7 = inlined_call_operand.hbm [shape: f32[16,512], index: 7, kind: output, shape index: {}]
  %s8 = sld [smem:[#allocation0]]
  $region50: #{tpu_custom_call.1} parent=0
    _
  %s10 = ssub.s32 1, %s8
  %s11 = scalar_select 0, %s10, %s8
  %12 = sst [smem:[#allocation2]] %s0
  %13 = sst [smem:[#allocation3]] %s1
  $region1: #{tpu_custom_call.1} parent=0
    #allocation4 [shape = 'u8[262144]{0}', space=vmem, size = 0x40000, scoped, tag = 'input window, operand 6, single buffered']
    #allocation5 [shape = 's32[1]{0}', space=sflag, size = 0x4, scoped, tag = 'scoped memory for tpu_custom_call.1']
    #allocation6 [shape = 's32[1]{0}', space=sflag, size = 0x4, scoped, tag = 'scoped memory for tpu_custom_call.1']
    #allocation7 [shape = 'u8[32768]{0}', space=vmem, size = 0x8000, scoped, tag = 'output window, operand 0, single buffered']
    %14 = vsyncpa [#allocation5], 0
    %15 = vsyncpa [#allocation6], 0
    // Predicated region
    $region2: #{tpu_custom_call.1} parent=1 // pred_check
      _
    $region3: #{tpu_custom_call.1} parent=1 // pred_check_branch
      %17 = sbr.rel (0) target = $region5
    $region4: #{tpu_custom_call.1} parent=1 // pred_region
      _
    $region5: #{tpu_custom_call.1} parent=1 // pred_fallthru
      _
    // Predicated region
    $region6: #{tpu_custom_call.1} parent=1 // pred_check
      _
    $region7: #{tpu_custom_call.1} parent=1 // pred_check_branch
      %19 = sbr.rel (0) target = $region9
    $region8: #{tpu_custom_call.1} parent=1 // pred_region
      _
    $region9: #{tpu_custom_call.1} parent=1 // pred_fallthru
      _
    // Predicated region
    $region10: #{tpu_custom_call.1} parent=1 // pred_check
      _
    $region11: #{tpu_custom_call.1} parent=1 // pred_check_branch
      %21 = sbr.rel (0) target = $region13
    $region12: #{tpu_custom_call.1} parent=1 // pred_region
      _
    $region13: #{tpu_custom_call.1} parent=1 // pred_fallthru
      _
    // Predicated region
    $region14: #{tpu_custom_call.1} parent=1 // pred_check
      _
    $region15: #{tpu_custom_call.1} parent=1 // pred_check_branch
      %23 = sbr.rel (0) target = $region17
    $region16: #{tpu_custom_call.1} parent=1 // pred_region
      _
    $region17: #{tpu_custom_call.1} parent=1 // pred_fallthru
      _
    // Predicated region
    $region18: #{tpu_custom_call.1} parent=1 // pred_check
      _
    $region19: #{tpu_custom_call.1} parent=1 // pred_check_branch
      %25 = sbr.rel (0) target = $region21
    $region20: #{tpu_custom_call.1} parent=1 // pred_region
      _
    $region21: #{tpu_custom_call.1} parent=1 // pred_fallthru
      _
    // Predicated region
    $region22: #{tpu_custom_call.1} parent=1 // pred_check
      _
    $region23: #{tpu_custom_call.1} parent=1 // pred_check_branch
      %27 = sbr.rel (0) target = $region25
    $region24: #{tpu_custom_call.1} parent=1 // pred_region
      _
    $region25: #{tpu_custom_call.1} parent=1 // pred_fallthru
      _
    // Predicated region
    $region26: #{tpu_custom_call.1} parent=1 // pred_check
      _
    $region27: #{tpu_custom_call.1} parent=1 // pred_check_branch
      %29 = sbr.rel (0) target = $region29
    $region28: #{tpu_custom_call.1} parent=1 // pred_region
      %s31 = ssub.s32 8192, 8192
      %32 = vsyncadd [#allocation5], %s31
      %s33 = sshll.u32 [#allocation4], 4
      %s34 = int_to_ptr.vmem [resolvable:$true] %s33
      %39 = dma.hbm_to_vmem [thread:$0]  %s6, 8192, %s34, [#allocation5], 128, 128, 8
    $region29: #{tpu_custom_call.1} parent=1 // pred_fallthru
      _
    // Predicated region
    $region30: #{tpu_custom_call.1} parent=1 // pred_check
      _
    $region31: #{tpu_custom_call.1} parent=1 // pred_check_branch
      %41 = sbr.rel (0) target = $region33
    $region32: #{tpu_custom_call.1} parent=1 // pred_region
      %42 = dma.done [#allocation5], 8192
    $region33: #{tpu_custom_call.1} parent=1 // pred_fallthru
      _
    %s43 = smul.u32 0, 512
    %s44 = sadd.s32 0, 0
    %s45 = sld [smem:[#allocation2 + %s44]]
    %p46 = scmp.ne.s32.totalorder %s45, 0
    %p47 = scmp.eq.s32.totalorder %s45, 0
    %v48 = vld [vmem:[%s5] sm:$0xff]
    %v49 = vld [vmem:[%s5 + $0x8] sm:$0xff]
    %v50 = vld [vmem:[#allocation4] sm:$0xff]
    %v51 = vld [vmem:[#allocation4 + $0x8] sm:$0xff]
    %v52 = vld [vmem:[#allocation4 + $0x10] sm:$0xff]
    %v53 = vld [vmem:[#allocation4 + $0x18] sm:$0xff]
    %v54 = vld [vmem:[#allocation4 + $0x20] sm:$0xff]
    %v55 = vld [vmem:[#allocation4 + $0x28] sm:$0xff]
    %v56 = vld [vmem:[#allocation4 + $0x30] sm:$0xff]
    %v57 = vld [vmem:[#allocation4 + $0x38] sm:$0xff]
    %v58 = vld [vmem:[#allocation4 + $0x40] sm:$0xff]
    %v59 = vld [vmem:[#allocation4 + $0x48] sm:$0xff]
    %v60 = vld [vmem:[#allocation4 + $0x50] sm:$0xff]
    %v61 = vld [vmem:[#allocation4 + $0x58] sm:$0xff]
    %v62 = vld [vmem:[#allocation4 + $0x60] sm:$0xff]
    %v63 = vld [vmem:[#allocation4 + $0x68] sm:$0xff]
    %v64 = vld [vmem:[#allocation4 + $0x70] sm:$0xff]
    %v65 = vld [vmem:[#allocation4 + $0x78] sm:$0xff]
    %v66 = vld [vmem:[#allocation4 + $0x80] sm:$0xff]
    %v67 = vld [vmem:[#allocation4 + $0x88] sm:$0xff]
    %v68 = vld [vmem:[#allocation4 + $0x90] sm:$0xff]
    %v69 = vld [vmem:[#allocation4 + $0x98] sm:$0xff]
    %v70 = vld [vmem:[#allocation4 + $0xa0] sm:$0xff]
    %v71 = vld [vmem:[#allocation4 + $0xa8] sm:$0xff]
    %v72 = vld [vmem:[#allocation4 + $0xb0] sm:$0xff]
    %v73 = vld [vmem:[#allocation4 + $0xb8] sm:$0xff]
    %v74 = vld [vmem:[#allocation4 + $0xc0] sm:$0xff]
    %v75 = vld [vmem:[#allocation4 + $0xc8] sm:$0xff]
    %v76 = vld [vmem:[#allocation4 + $0xd0] sm:$0xff]
    %v77 = vld [vmem:[#allocation4 + $0xd8] sm:$0xff]
    %v78 = vld [vmem:[#allocation4 + $0xe0] sm:$0xff]
    %v79 = vld [vmem:[#allocation4 + $0xe8] sm:$0xff]
    %v80 = vld [vmem:[#allocation4 + $0xf0] sm:$0xff]
    %v81 = vld [vmem:[#allocation4 + $0xf8] sm:$0xff]
    %v82 = vld [vmem:[#allocation4 + $0x100] sm:$0xff]
    %v83 = vld [vmem:[#allocation4 + $0x108] sm:$0xff]
    %v84 = vld [vmem:[#allocation4 + $0x110] sm:$0xff]
    %v85 = vld [vmem:[#allocation4 + $0x118] sm:$0xff]
    %v86 = vld [vmem:[#allocation4 + $0x120] sm:$0xff]
    %v87 = vld [vmem:[#allocation4 + $0x128] sm:$0xff]
    %v88 = vld [vmem:[#allocation4 + $0x130] sm:$0xff]
    %v89 = vld [vmem:[#allocation4 + $0x138] sm:$0xff]
    %v90 = vld [vmem:[#allocation4 + $0x140] sm:$0xff]
    %v91 = vld [vmem:[#allocation4 + $0x148] sm:$0xff]
    %v92 = vld [vmem:[#allocation4 + $0x150] sm:$0xff]
    %v93 = vld [vmem:[#allocation4 + $0x158] sm:$0xff]
    %v94 = vld [vmem:[#allocation4 + $0x160] sm:$0xff]
    %v95 = vld [vmem:[#allocation4 + $0x168] sm:$0xff]
    %v96 = vld [vmem:[#allocation4 + $0x170] sm:$0xff]
    %v97 = vld [vmem:[#allocation4 + $0x178] sm:$0xff]
    %v98 = vld [vmem:[#allocation4 + $0x180] sm:$0xff]
    %v99 = vld [vmem:[#allocation4 + $0x188] sm:$0xff]
    %v100 = vld [vmem:[#allocation4 + $0x190] sm:$0xff]
    %v101 = vld [vmem:[#allocation4 + $0x198] sm:$0xff]
    %v102 = vld [vmem:[#allocation4 + $0x1a0] sm:$0xff]
    %v103 = vld [vmem:[#allocation4 + $0x1a8] sm:$0xff]
    %v104 = vld [vmem:[#allocation4 + $0x1b0] sm:$0xff]
    %v105 = vld [vmem:[#allocation4 + $0x1b8] sm:$0xff]
    %v106 = vld [vmem:[#allocation4 + $0x1c0] sm:$0xff]
    %v107 = vld [vmem:[#allocation4 + $0x1c8] sm:$0xff]
    %v108 = vld [vmem:[#allocation4 + $0x1d0] sm:$0xff]
    %v109 = vld [vmem:[#allocation4 + $0x1d8] sm:$0xff]
    %v110 = vld [vmem:[#allocation4 + $0x1e0] sm:$0xff]
    %v111 = vld [vmem:[#allocation4 + $0x1e8] sm:$0xff]
    %v112 = vld [vmem:[#allocation4 + $0x1f0] sm:$0xff]
    %v113 = vld [vmem:[#allocation4 + $0x1f8] sm:$0xff]
    %v116 = vunpack.c.l.b16 %v48
    %v117 = vunpack.c.h.b16 %v48
    %v118 = vunpack.c.l.b16 %v49
    %v119 = vunpack.c.h.b16 %v49
    %v120 = vpack.c.b16 %v118, %v116
    %v121 = vpack.c.b16 %v119, %v117
    %v188 = vunpack.c.l.b16 %v50
    %v189 = vunpack.c.h.b16 %v50
    %v190 = vunpack.c.l.b16 %v51
    %v191 = vunpack.c.h.b16 %v51
    %v192 = vunpack.c.l.b16 %v52
    %v193 = vunpack.c.h.b16 %v52
    %v194 = vunpack.c.l.b16 %v53
    %v195 = vunpack.c.h.b16 %v53
    %v196 = vunpack.c.l.b16 %v54
    %v197 = vunpack.c.h.b16 %v54
    %v198 = vunpack.c.l.b16 %v55
    %v199 = vunpack.c.h.b16 %v55
    %v200 = vunpack.c.l.b16 %v56
    %v201 = vunpack.c.h.b16 %v56
    %v202 = vunpack.c.l.b16 %v57
    %v203 = vunpack.c.h.b16 %v57
    %v204 = vunpack.c.l.b16 %v58
    %v205 = vunpack.c.h.b16 %v58
    %v206 = vunpack.c.l.b16 %v59
    %v207 = vunpack.c.h.b16 %v59
    %v208 = vunpack.c.l.b16 %v60
    %v209 = vunpack.c.h.b16 %v60
    %v210 = vunpack.c.l.b16 %v61
    %v211 = vunpack.c.h.b16 %v61
    %v212 = vunpack.c.l.b16 %v62
    %v213 = vunpack.c.h.b16 %v62
    %v214 = vunpack.c.l.b16 %v63
    %v215 = vunpack.c.h.b16 %v63
    %v216 = vunpack.c.l.b16 %v64
    %v217 = vunpack.c.h.b16 %v64
    %v218 = vunpack.c.l.b16 %v65
    %v219 = vunpack.c.h.b16 %v65
    %v220 = vunpack.c.l.b16 %v66
    %v221 = vunpack.c.h.b16 %v66
    %v222 = vunpack.c.l.b16 %v67
    %v223 = vunpack.c.h.b16 %v67
    %v224 = vunpack.c.l.b16 %v68
    %v225 = vunpack.c.h.b16 %v68
    %v226 = vunpack.c.l.b16 %v69
    %v227 = vunpack.c.h.b16 %v69
    %v228 = vunpack.c.l.b16 %v70
    %v229 = vunpack.c.h.b16 %v70
    %v230 = vunpack.c.l.b16 %v71
    %v231 = vunpack.c.h.b16 %v71
    %v232 = vunpack.c.l.b16 %v72
    %v233 = vunpack.c.h.b16 %v72
    %v234 = vunpack.c.l.b16 %v73
    %v235 = vunpack.c.h.b16 %v73
    %v236 = vunpack.c.l.b16 %v74
    %v237 = vunpack.c.h.b16 %v74
    %v238 = vunpack.c.l.b16 %v75
    %v239 = vunpack.c.h.b16 %v75
    %v240 = vunpack.c.l.b16 %v76
    %v241 = vunpack.c.h.b16 %v76
    %v242 = vunpack.c.l.b16 %v77
    %v243 = vunpack.c.h.b16 %v77
    %v244 = vunpack.c.l.b16 %v78
    %v245 = vunpack.c.h.b16 %v78
    %v246 = vunpack.c.l.b16 %v79
    %v247 = vunpack.c.h.b16 %v79
    %v248 = vunpack.c.l.b16 %v80
    %v249 = vunpack.c.h.b16 %v80
    %v250 = vunpack.c.l.b16 %v81
    %v251 = vunpack.c.h.b16 %v81
    %v252 = vunpack.c.l.b16 %v82
    %v253 = vunpack.c.h.b16 %v82
    %v254 = vunpack.c.l.b16 %v83
    %v255 = vunpack.c.h.b16 %v83
    %v256 = vunpack.c.l.b16 %v84
    %v257 = vunpack.c.h.b16 %v84
    %v258 = vunpack.c.l.b16 %v85
    %v259 = vunpack.c.h.b16 %v85
    %v260 = vunpack.c.l.b16 %v86
    %v261 = vunpack.c.h.b16 %v86
    %v262 = vunpack.c.l.b16 %v87
    %v263 = vunpack.c.h.b16 %v87
    %v264 = vunpack.c.l.b16 %v88
    %v265 = vunpack.c.h.b16 %v88
    %v266 = vunpack.c.l.b16 %v89
    %v267 = vunpack.c.h.b16 %v89
    %v268 = vunpack.c.l.b16 %v90
    %v269 = vunpack.c.h.b16 %v90
    %v270 = vunpack.c.l.b16 %v91
    %v271 = vunpack.c.h.b16 %v91
    %v272 = vunpack.c.l.b16 %v92
    %v273 = vunpack.c.h.b16 %v92
    %v274 = vunpack.c.l.b16 %v93
    %v275 = vunpack.c.h.b16 %v93
    %v276 = vunpack.c.l.b16 %v94
    %v277 = vunpack.c.h.b16 %v94
    %v278 = vunpack.c.l.b16 %v95
    %v279 = vunpack.c.h.b16 %v95
    %v280 = vunpack.c.l.b16 %v96
    %v281 = vunpack.c.h.b16 %v96
    %v282 = vunpack.c.l.b16 %v97
    %v283 = vunpack.c.h.b16 %v97
    %v284 = vunpack.c.l.b16 %v98
    %v285 = vunpack.c.h.b16 %v98
    %v286 = vunpack.c.l.b16 %v99
    %v287 = vunpack.c.h.b16 %v99
    %v288 = vunpack.c.l.b16 %v100
    %v289 = vunpack.c.h.b16 %v100
    %v290 = vunpack.c.l.b16 %v101
    %v291 = vunpack.c.h.b16 %v101
    %v292 = vunpack.c.l.b16 %v102
    %v293 = vunpack.c.h.b16 %v102
    %v294 = vunpack.c.l.b16 %v103
    %v295 = vunpack.c.h.b16 %v103
    %v296 = vunpack.c.l.b16 %v104
    %v297 = vunpack.c.h.b16 %v104
    %v298 = vunpack.c.l.b16 %v105
    %v299 = vunpack.c.h.b16 %v105
    %v300 = vunpack.c.l.b16 %v106
    %v301 = vunpack.c.h.b16 %v106
    %v302 = vunpack.c.l.b16 %v107
    %v303 = vunpack.c.h.b16 %v107
    %v304 = vunpack.c.l.b16 %v108
    %v305 = vunpack.c.h.b16 %v108
    %v306 = vunpack.c.l.b16 %v109
    %v307 = vunpack.c.h.b16 %v109
    %v308 = vunpack.c.l.b16 %v110
    %v309 = vunpack.c.h.b16 %v110
    %v310 = vunpack.c.l.b16 %v111
    %v311 = vunpack.c.h.b16 %v111
    %v312 = vunpack.c.l.b16 %v112
    %v313 = vunpack.c.h.b16 %v112
    %v314 = vunpack.c.l.b16 %v113
    %v315 = vunpack.c.h.b16 %v113
    %v316 = vpack.c.b16 %v190, %v188
    %v317 = vpack.c.b16 %v191, %v189
    %v318 = vpack.c.b16 %v194, %v192
    %v319 = vpack.c.b16 %v195, %v193
    %v320 = vpack.c.b16 %v198, %v196
    %v321 = vpack.c.b16 %v199, %v197
    %v322 = vpack.c.b16 %v202, %v200
    %v323 = vpack.c.b16 %v203, %v201
    %v324 = vpack.c.b16 %v206, %v204
    %v325 = vpack.c.b16 %v207, %v205
    %v326 = vpack.c.b16 %v210, %v208
    %v327 = vpack.c.b16 %v211, %v209
    %v328 = vpack.c.b16 %v214, %v212
    %v329 = vpack.c.b16 %v215, %v213
    %v330 = vpack.c.b16 %v218, %v216
    %v331 = vpack.c.b16 %v219, %v217
    %v332 = vpack.c.b16 %v222, %v220
    %v333 = vpack.c.b16 %v223, %v221
    %v334 = vpack.c.b16 %v226, %v224
    %v335 = vpack.c.b16 %v227, %v225
    %v336 = vpack.c.b16 %v230, %v228
    %v337 = vpack.c.b16 %v231, %v229
    %v338 = vpack.c.b16 %v234, %v232
    %v339 = vpack.c.b16 %v235, %v233
    %v340 = vpack.c.b16 %v238, %v236
    %v341 = vpack.c.b16 %v239, %v237
    %v342 = vpack.c.b16 %v242, %v240
    %v343 = vpack.c.b16 %v243, %v241
    %v344 = vpack.c.b16 %v246, %v244
    %v345 = vpack.c.b16 %v247, %v245
    %v346 = vpack.c.b16 %v250, %v248
    %v347 = vpack.c.b16 %v251, %v249
    %v348 = vpack.c.b16 %v254, %v252
    %v349 = vpack.c.b16 %v255, %v253
    %v350 = vpack.c.b16 %v258, %v256
    %v351 = vpack.c.b16 %v259, %v257
    %v352 = vpack.c.b16 %v262, %v260
    %v353 = vpack.c.b16 %v263, %v261
    %v354 = vpack.c.b16 %v266, %v264
    %v355 = vpack.c.b16 %v267, %v265
    %v356 = vpack.c.b16 %v270, %v268
    %v357 = vpack.c.b16 %v271, %v269
    %v358 = vpack.c.b16 %v274, %v272
    %v359 = vpack.c.b16 %v275, %v273
    %v360 = vpack.c.b16 %v278, %v276
    %v361 = vpack.c.b16 %v279, %v277
    %v362 = vpack.c.b16 %v282, %v280
    %v363 = vpack.c.b16 %v283, %v281
    %v364 = vpack.c.b16 %v286, %v284
    %v365 = vpack.c.b16 %v287, %v285
    %v366 = vpack.c.b16 %v290, %v288
    %v367 = vpack.c.b16 %v291, %v289
    %v368 = vpack.c.b16 %v294, %v292
    %v369 = vpack.c.b16 %v295, %v293
    %v370 = vpack.c.b16 %v298, %v296
    %v371 = vpack.c.b16 %v299, %v297
    %v372 = vpack.c.b16 %v302, %v300
    %v373 = vpack.c.b16 %v303, %v301
    %v374 = vpack.c.b16 %v306, %v304
    %v375 = vpack.c.b16 %v307, %v305
    %v376 = vpack.c.b16 %v310, %v308
    %v377 = vpack.c.b16 %v311, %v309
    %v378 = vpack.c.b16 %v314, %v312
    %v379 = vpack.c.b16 %v315, %v313
    %444 = vmatprep.subr.bf16.mxu0 %v331
    %445 = vmatpush1.bf16.xpose.msra.mxu0 %v330
    %446 = vmatprep.subr.bf16.mxu0 %v329
    %447 = vmatpush1.bf16.xpose.msra.mxu0 %v328
    %448 = vmatprep.subr.bf16.mxu0 %v327
    %449 = vmatpush1.bf16.xpose.msra.mxu0 %v326
    %450 = vmatprep.subr.bf16.mxu0 %v325
    %451 = vmatpush1.bf16.xpose.msra.mxu0 %v324
    %452 = vmatprep.subr.bf16.mxu0 %v323
    %453 = vmatpush1.bf16.xpose.msra.mxu0 %v322
    %454 = vmatprep.subr.bf16.mxu0 %v321
    %455 = vmatpush1.bf16.xpose.msra.mxu0 %v320
    %456 = vmatprep.subr.bf16.mxu0 %v319
    %457 = vmatpush1.bf16.xpose.msra.mxu0 %v318
    %458 = vmatprep.subr.bf16.mxu0 %v317
    %459 = vmatpush1.bf16.xpose.msra.mxu0 %v316
    %460 = vmatprep.subr.bf16.mxu0 %v347
    %461 = vmatpush2.bf16.xpose.msra.mxu0 %v346
    %462 = vmatprep.subr.bf16.mxu0 %v345
    %463 = vmatpush2.bf16.xpose.msra.mxu0 %v344
    %464 = vmatprep.subr.bf16.mxu0 %v343
    %465 = vmatpush2.bf16.xpose.msra.mxu0 %v342
    %466 = vmatprep.subr.bf16.mxu0 %v341
    %467 = vmatpush2.bf16.xpose.msra.mxu0 %v340
    %468 = vmatprep.subr.bf16.mxu0 %v339
    %469 = vmatpush2.bf16.xpose.msra.mxu0 %v338
    %470 = vmatprep.subr.bf16.mxu0 %v337
    %471 = vmatpush2.bf16.xpose.msra.mxu0 %v336
    %472 = vmatprep.subr.bf16.mxu0 %v335
    %473 = vmatpush2.bf16.xpose.msra.mxu0 %v334
    %474 = vmatprep.subr.bf16.mxu0 %v333
    %475 = vmatpush2.bf16.xpose.msra.mxu0 %v332
    %476 = vmatprep.mubr.bf16.mxu0 %v121
    %477 = vmatmul.mubr.bf16.gmra.mxu0 %v120
    %v478 = vpop.f32.mrf.mxu0
    %v479 = vadd.f32 0.0, %v478
    %v480 = vpop.f32.mrf.mxu0
    %v481 = vadd.f32 0.0, %v480
    %v482 = vpop.f32.mrf.mxu0
    %v483 = vadd.f32 0.0, %v482
    %v484 = vpop.f32.mrf.mxu0
    %v485 = vadd.f32 0.0, %v484
    %486 = vdwg.mxu0
    %487 = vmatprep.subr.bf16.mxu0 %v363
    %488 = vmatpush1.bf16.xpose.msra.mxu0 %v362
    %489 = vmatprep.subr.bf16.mxu0 %v361
    %490 = vmatpush1.bf16.xpose.msra.mxu0 %v360
    %491 = vmatprep.subr.bf16.mxu0 %v359
    %492 = vmatpush1.bf16.xpose.msra.mxu0 %v358
    %493 = vmatprep.subr.bf16.mxu0 %v357
    %494 = vmatpush1.bf16.xpose.msra.mxu0 %v356
    %495 = vmatprep.subr.bf16.mxu0 %v355
    %496 = vmatpush1.bf16.xpose.msra.mxu0 %v354
    %497 = vmatprep.subr.bf16.mxu0 %v353
    %498 = vmatpush1.bf16.xpose.msra.mxu0 %v352
    %499 = vmatprep.subr.bf16.mxu0 %v351
    %500 = vmatpush1.bf16.xpose.msra.mxu0 %v350
    %501 = vmatprep.subr.bf16.mxu0 %v349
    %502 = vmatpush1.bf16.xpose.msra.mxu0 %v348
    %503 = vmatprep.subr.bf16.mxu0 %v379
    %504 = vmatpush2.bf16.xpose.msra.mxu0 %v378
    %505 = vmatprep.subr.bf16.mxu0 %v377
    %506 = vmatpush2.bf16.xpose.msra.mxu0 %v376
    %507 = vmatprep.subr.bf16.mxu0 %v375
    %508 = vmatpush2.bf16.xpose.msra.mxu0 %v374
    %509 = vmatprep.subr.bf16.mxu0 %v373
    %510 = vmatpush2.bf16.xpose.msra.mxu0 %v372
    %511 = vmatprep.subr.bf16.mxu0 %v371
    %512 = vmatpush2.bf16.xpose.msra.mxu0 %v370
    %513 = vmatprep.subr.bf16.mxu0 %v369
    %514 = vmatpush2.bf16.xpose.msra.mxu0 %v368
    %515 = vmatprep.subr.bf16.mxu0 %v367
    %516 = vmatpush2.bf16.xpose.msra.mxu0 %v366
    %517 = vmatprep.subr.bf16.mxu0 %v365
    %518 = vmatpush2.bf16.xpose.msra.mxu0 %v364
    %519 = vmatprep.mubr.bf16.mxu0 %v121
    %520 = vmatmul.mubr.bf16.gmra.mxu0 %v120
    %v521 = vpop.f32.mrf.mxu0
    %v522 = vadd.f32 0.0, %v521
    %v523 = vpop.f32.mrf.mxu0
    %v524 = vadd.f32 0.0, %v523
    %v525 = vpop.f32.mrf.mxu0
    %v526 = vadd.f32 0.0, %v525
    %v527 = vpop.f32.mrf.mxu0
    %v528 = vadd.f32 0.0, %v527
    %529 = vdwg.mxu0
    // Predicated region
    $region34: #{tpu_custom_call.1} parent=1 // pred_check
      %p530 = pneg %p47
    $region35: #{tpu_custom_call.1} parent=1 // pred_check_branch
      %532 = sbr.rel (%p530) target = $region37
    $region36: #{tpu_custom_call.1} parent=1 // pred_region
      %v533 = vld [vmem:[%s3] sm:$0xff]
      %v534 = vld [vmem:[%s3 + $0x8] sm:$0xff]
      %v535 = vmax.f32 %v533, 1e-12
      %v536 = vmax.f32 %v534, 1e-12
      %v537 = vrcp.pop %v535
      %v538 = vmul.f32 1.0, %v537
      %v539 = vrcp.pop %v536
      %v540 = vmul.f32 1.0, %v539
      %542 = vset.pattern.permute.xlu0 0
      %543 = vperm.xlu0 %542, %v538
      %v544 = vpop.permute.xlu0 %543
      %547 = vset.pattern.permute.xlu0 0
      %548 = vperm.xlu0 %547, %v540
      %v549 = vpop.permute.xlu0 %548
      %v551 = vmul.f32 %v479, %v544
      %v552 = vmul.f32 %v481, %v544
      %v553 = vmul.f32 %v522, %v544
      %v554 = vmul.f32 %v524, %v544
      %v555 = vmul.f32 %v483, %v549
      %v556 = vmul.f32 %v485, %v549
      %v557 = vmul.f32 %v526, %v549
      %v558 = vmul.f32 %v528, %v549
      %v559 = vld [vmem:[%s4] sm:$0xf]
      %v561 = vlaneseq
      %v562 = vshrl.u32 %v561, 7
      %v563 = vsub.s32 0, %v562
      %v564 = vrot.slane %v559, %v563
      %v565 = vlaneseq
      %v566 = vshrl.u32 %v565, 7
      %v567 = vsub.s32 1, %v566
      %v568 = vrot.slane %v559, %v567
      %v569 = vlaneseq
      %v570 = vshrl.u32 %v569, 7
      %v571 = vsub.s32 2, %v570
      %v572 = vrot.slane %v559, %v571
      %v573 = vlaneseq
      %v574 = vshrl.u32 %v573, 7
      %v575 = vsub.s32 3, %v574
      %v576 = vrot.slane %v559, %v575
      %v581 = vmul.f32 %v551, %v564
      %v582 = vmul.f32 %v552, %v568
      %v583 = vmul.f32 %v553, %v572
      %v584 = vmul.f32 %v554, %v576
      %v585 = vmul.f32 %v555, %v564
      %v586 = vmul.f32 %v556, %v568
      %v587 = vmul.f32 %v557, %v572
      %v588 = vmul.f32 %v558, %v576
      %v589 = vmax.f32 %v581, -1.0
      %v590 = vmax.f32 %v582, -1.0
      %v591 = vmax.f32 %v583, -1.0
      %v592 = vmax.f32 %v584, -1.0
      %v593 = vmax.f32 %v585, -1.0
      %v594 = vmax.f32 %v586, -1.0
      %v595 = vmax.f32 %v587, -1.0
      %v596 = vmax.f32 %v588, -1.0
      %v597 = vmin.f32 %v589, 1.0
      %v598 = vmin.f32 %v590, 1.0
      %v599 = vmin.f32 %v591, 1.0
      %v600 = vmin.f32 %v592, 1.0
      %v601 = vmin.f32 %v593, 1.0
      %v602 = vmin.f32 %v594, 1.0
      %v603 = vmin.f32 %v595, 1.0
      %v604 = vmin.f32 %v596, 1.0
      %606 = vset.pattern.permute.xlu0 0
      %607 = vperm.xlu0 %606, %v533
      %v608 = vpop.permute.xlu0 %607
      %611 = vset.pattern.permute.xlu0 0
      %612 = vperm.xlu0 %611, %v534
      %v613 = vpop.permute.xlu0 %612
      %v615 = vmul.f32 %v597, %v608
      %v616 = vmul.f32 %v598, %v608
      %v617 = vmul.f32 %v599, %v608
      %v618 = vmul.f32 %v600, %v608
      %v619 = vmul.f32 %v601, %v613
      %v620 = vmul.f32 %v602, %v613
      %v621 = vmul.f32 %v603, %v613
      %v622 = vmul.f32 %v604, %v613
      %623 = vst [vmem:[#allocation7] sm:$0xff] %v615
      %624 = vst [vmem:[#allocation7 + $0x8] sm:$0xff] %v616
      %625 = vst [vmem:[#allocation7 + $0x10] sm:$0xff] %v617
      %626 = vst [vmem:[#allocation7 + $0x18] sm:$0xff] %v618
      %627 = vst [vmem:[#allocation7 + $0x20] sm:$0xff] %v619
      %628 = vst [vmem:[#allocation7 + $0x28] sm:$0xff] %v620
      %629 = vst [vmem:[#allocation7 + $0x30] sm:$0xff] %v621
      %630 = vst [vmem:[#allocation7 + $0x38] sm:$0xff] %v622
    $region37: #{tpu_custom_call.1} parent=1 // pred_fallthru
      _
    // Predicated region
    $region38: #{tpu_custom_call.1} parent=1 // pred_check
      %p631 = pneg %p46
    $region39: #{tpu_custom_call.1} parent=1 // pred_check_branch
      %633 = sbr.rel (%p631) target = $region41
    $region40: #{tpu_custom_call.1} parent=1 // pred_region
      %v634 = vld [vmem:[%s3] sm:$0xff]
      %v635 = vld [vmem:[%s3 + $0x8] sm:$0xff]
      %v636 = vmax.f32 %v634, 1e-12
      %v637 = vmax.f32 %v635, 1e-12
      %v638 = vrcp.pop %v636
      %v639 = vmul.f32 1.0, %v638
      %v640 = vrcp.pop %v637
      %v641 = vmul.f32 1.0, %v640
      %643 = vset.pattern.permute.xlu0 0
      %644 = vperm.xlu0 %643, %v639
      %v645 = vpop.permute.xlu0 %644
      %648 = vset.pattern.permute.xlu0 0
      %649 = vperm.xlu0 %648, %v641
      %v650 = vpop.permute.xlu0 %649
      %v652 = vmul.f32 %v479, %v645
      %v653 = vmul.f32 %v481, %v645
      %v654 = vmul.f32 %v522, %v645
      %v655 = vmul.f32 %v524, %v645
      %v656 = vmul.f32 %v483, %v650
      %v657 = vmul.f32 %v485, %v650
      %v658 = vmul.f32 %v526, %v650
      %v659 = vmul.f32 %v528, %v650
      %v660 = vld [vmem:[%s4] sm:$0xf]
      %v662 = vlaneseq
      %v663 = vshrl.u32 %v662, 7
      %v664 = vsub.s32 0, %v663
      %v665 = vrot.slane %v660, %v664
      %v666 = vlaneseq
      %v667 = vshrl.u32 %v666, 7
      %v668 = vsub.s32 1, %v667
      %v669 = vrot.slane %v660, %v668
      %v670 = vlaneseq
      %v671 = vshrl.u32 %v670, 7
      %v672 = vsub.s32 2, %v671
      %v673 = vrot.slane %v660, %v672
      %v674 = vlaneseq
      %v675 = vshrl.u32 %v674, 7
      %v676 = vsub.s32 3, %v675
      %v677 = vrot.slane %v660, %v676
      %v682 = vmul.f32 %v652, %v665
      %v683 = vmul.f32 %v653, %v669
      %v684 = vmul.f32 %v654, %v673
      %v685 = vmul.f32 %v655, %v677
      %v686 = vmul.f32 %v656, %v665
      %v687 = vmul.f32 %v657, %v669
      %v688 = vmul.f32 %v658, %v673
      %v689 = vmul.f32 %v659, %v677
      %v690 = vmax.f32 %v682, -1.0
      %v691 = vmax.f32 %v683, -1.0
      %v692 = vmax.f32 %v684, -1.0
      %v693 = vmax.f32 %v685, -1.0
      %v694 = vmax.f32 %v686, -1.0
      %v695 = vmax.f32 %v687, -1.0
      %v696 = vmax.f32 %v688, -1.0
      %v697 = vmax.f32 %v689, -1.0
      %v698 = vmin.f32 %v690, 1.0
      %v699 = vmin.f32 %v691, 1.0
      %v700 = vmin.f32 %v692, 1.0
      %v701 = vmin.f32 %v693, 1.0
      %v702 = vmin.f32 %v694, 1.0
      %v703 = vmin.f32 %v695, 1.0
      %v704 = vmin.f32 %v696, 1.0
      %v705 = vmin.f32 %v697, 1.0
      %v706 = vmul.f32 %v698, %v698
      %v707 = vmul.f32 %v699, %v699
      %v708 = vmul.f32 %v700, %v700
      %v709 = vmul.f32 %v701, %v701
      %v710 = vmul.f32 %v702, %v702
      %v711 = vmul.f32 %v703, %v703
      %v712 = vmul.f32 %v704, %v704
      %v713 = vmul.f32 %v705, %v705
      %v714 = vmul.f32 %v706, 8.0
      %v715 = vmul.f32 %v707, 8.0
      %v716 = vmul.f32 %v708, 8.0
      %v717 = vmul.f32 %v709, 8.0
      %v718 = vmul.f32 %v710, 8.0
      %v719 = vmul.f32 %v711, 8.0
      %v720 = vmul.f32 %v712, 8.0
      %v721 = vmul.f32 %v713, 8.0
      %v722 = vsub.f32 %v714, 8.0
      %v723 = vsub.f32 %v715, 8.0
      %v724 = vsub.f32 %v716, 8.0
      %v725 = vsub.f32 %v717, 8.0
      %v726 = vsub.f32 %v718, 8.0
      %v727 = vsub.f32 %v719, 8.0
      %v728 = vsub.f32 %v720, 8.0
      %v729 = vsub.f32 %v721, 8.0
      %v730 = vmul.f32 %v722, %v706
      %v731 = vmul.f32 %v723, %v707
      %v732 = vmul.f32 %v724, %v708
      %v733 = vmul.f32 %v725, %v709
      %v734 = vmul.f32 %v726, %v710
      %v735 = vmul.f32 %v727, %v711
      %v736 = vmul.f32 %v728, %v712
      %v737 = vmul.f32 %v729, %v713
      %v738 = vadd.f32 %v730, 1.0
      %v739 = vadd.f32 %v731, 1.0
      %v740 = vadd.f32 %v732, 1.0
      %v741 = vadd.f32 %v733, 1.0
      %v742 = vadd.f32 %v734, 1.0
      %v743 = vadd.f32 %v735, 1.0
      %v744 = vadd.f32 %v736, 1.0
      %v745 = vadd.f32 %v737, 1.0
      %vm746 = vcmp.le.f32.partialorder %v698, 0.70710677
      %vm747 = vcmp.le.f32.partialorder %v699, 0.70710677
      %vm748 = vcmp.le.f32.partialorder %v700, 0.70710677
      %vm749 = vcmp.le.f32.partialorder %v701, 0.70710677
      %vm750 = vcmp.le.f32.partialorder %v702, 0.70710677
      %vm751 = vcmp.le.f32.partialorder %v703, 0.70710677
      %vm752 = vcmp.le.f32.partialorder %v704, 0.70710677
      %vm753 = vcmp.le.f32.partialorder %v705, 0.70710677
      %v754 = vsel %vm746, 1.0, 0.0
      %v755 = vsel %vm747, 1.0, 0.0
      %v756 = vsel %vm748, 1.0, 0.0
      %v757 = vsel %vm749, 1.0, 0.0
      %v758 = vsel %vm750, 1.0, 0.0
      %v759 = vsel %vm751, 1.0, 0.0
      %v760 = vsel %vm752, 1.0, 0.0
      %v761 = vsel %vm753, 1.0, 0.0
      %v762 = vadd.f32 %v754, 0.0
      %v763 = vadd.f32 %v755, 0.0
      %v764 = vadd.f32 %v756, 0.0
      %v765 = vadd.f32 %v757, 0.0
      %v766 = vadd.f32 %v758, 0.0
      %v767 = vadd.f32 %v759, 0.0
      %v768 = vadd.f32 %v760, 0.0
      %v769 = vadd.f32 %v761, 0.0
      %v770 = vsel %vm746, -1.0, 1.0
      %v771 = vsel %vm747, -1.0, 1.0
      %v772 = vsel %vm748, -1.0, 1.0
      %v773 = vsel %vm749, -1.0, 1.0
      %v774 = vsel %vm750, -1.0, 1.0
      %v775 = vsel %vm751, -1.0, 1.0
      %v776 = vsel %vm752, -1.0, 1.0
      %v777 = vsel %vm753, -1.0, 1.0
      %vm778 = vcmp.le.f32.partialorder %v698, 6.123234e-17
      %vm779 = vcmp.le.f32.partialorder %v699, 6.123234e-17
      %vm780 = vcmp.le.f32.partialorder %v700, 6.123234e-17
      %vm781 = vcmp.le.f32.partialorder %v701, 6.123234e-17
      %vm782 = vcmp.le.f32.partialorder %v702, 6.123234e-17
      %vm783 = vcmp.le.f32.partialorder %v703, 6.123234e-17
      %vm784 = vcmp.le.f32.partialorder %v704, 6.123234e-17
      %vm785 = vcmp.le.f32.partialorder %v705, 6.123234e-17
      %v786 = vsel %vm778, 1.0, 0.0
      %v787 = vsel %vm779, 1.0, 0.0
      %v788 = vsel %vm780, 1.0, 0.0
      %v789 = vsel %vm781, 1.0, 0.0
      %v790 = vsel %vm782, 1.0, 0.0
      %v791 = vsel %vm783, 1.0, 0.0
      %v792 = vsel %vm784, 1.0, 0.0
      %v793 = vsel %vm785, 1.0, 0.0
      %v794 = vadd.f32 %v762, %v786
      %v795 = vadd.f32 %v763, %v787
      %v796 = vadd.f32 %v764, %v788
      %v797 = vadd.f32 %v765, %v789
      %v798 = vadd.f32 %v766, %v790
      %v799 = vadd.f32 %v767, %v791
      %v800 = vadd.f32 %v768, %v792
      %v801 = vadd.f32 %v769, %v793
      %v802 = vsub.f32 0.0, %v770
      %v803 = vsub.f32 0.0, %v771
      %v804 = vsub.f32 0.0, %v772
      %v805 = vsub.f32 0.0, %v773
      %v806 = vsub.f32 0.0, %v774
      %v807 = vsub.f32 0.0, %v775
      %v808 = vsub.f32 0.0, %v776
      %v809 = vsub.f32 0.0, %v777
      %v810 = vsel %vm778, %v802, %v770
      %v811 = vsel %vm779, %v803, %v771
      %v812 = vsel %vm780, %v804, %v772
      %v813 = vsel %vm781, %v805, %v773
      %v814 = vsel %vm782, %v806, %v774
      %v815 = vsel %vm783, %v807, %v775
      %v816 = vsel %vm784, %v808, %v776
      %v817 = vsel %vm785, %v809, %v777
      %vm818 = vcmp.le.f32.partialorder %v698, -0.70710677
      %vm819 = vcmp.le.f32.partialorder %v699, -0.70710677
      %vm820 = vcmp.le.f32.partialorder %v700, -0.70710677
      %vm821 = vcmp.le.f32.partialorder %v701, -0.70710677
      %vm822 = vcmp.le.f32.partialorder %v702, -0.70710677
      %vm823 = vcmp.le.f32.partialorder %v703, -0.70710677
      %vm824 = vcmp.le.f32.partialorder %v704, -0.70710677
      %vm825 = vcmp.le.f32.partialorder %v705, -0.70710677
      %v826 = vsel %vm818, 1.0, 0.0
      %v827 = vsel %vm819, 1.0, 0.0
      %v828 = vsel %vm820, 1.0, 0.0
      %v829 = vsel %vm821, 1.0, 0.0
      %v830 = vsel %vm822, 1.0, 0.0
      %v831 = vsel %vm823, 1.0, 0.0
      %v832 = vsel %vm824, 1.0, 0.0
      %v833 = vsel %vm825, 1.0, 0.0
      %v834 = vadd.f32 %v794, %v826
      %v835 = vadd.f32 %v795, %v827
      %v836 = vadd.f32 %v796, %v828
      %v837 = vadd.f32 %v797, %v829
      %v838 = vadd.f32 %v798, %v830
      %v839 = vadd.f32 %v799, %v831
      %v840 = vadd.f32 %v800, %v832
      %v841 = vadd.f32 %v801, %v833
      %v842 = vsub.f32 0.0, %v810
      %v843 = vsub.f32 0.0, %v811
      %v844 = vsub.f32 0.0, %v812
      %v845 = vsub.f32 0.0, %v813
      %v846 = vsub.f32 0.0, %v814
      %v847 = vsub.f32 0.0, %v815
      %v848 = vsub.f32 0.0, %v816
      %v849 = vsub.f32 0.0, %v817
      %v850 = vsel %vm818, %v842, %v810
      %v851 = vsel %vm819, %v843, %v811
      %v852 = vsel %vm820, %v844, %v812
      %v853 = vsel %vm821, %v845, %v813
      %v854 = vsel %vm822, %v846, %v814
      %v855 = vsel %vm823, %v847, %v815
      %v856 = vsel %vm824, %v848, %v816
      %v857 = vsel %vm825, %v849, %v817
      %vm858 = vcmp.le.f32.partialorder %v698, -1.0
      %vm859 = vcmp.le.f32.partialorder %v699, -1.0
      %vm860 = vcmp.le.f32.partialorder %v700, -1.0
      %vm861 = vcmp.le.f32.partialorder %v701, -1.0
      %vm862 = vcmp.le.f32.partialorder %v702, -1.0
      %vm863 = vcmp.le.f32.partialorder %v703, -1.0
      %vm864 = vcmp.le.f32.partialorder %v704, -1.0
      %vm865 = vcmp.le.f32.partialorder %v705, -1.0
      %v866 = vsel %vm858, 1.0, 0.0
      %v867 = vsel %vm859, 1.0, 0.0
      %v868 = vsel %vm860, 1.0, 0.0
      %v869 = vsel %vm861, 1.0, 0.0
      %v870 = vsel %vm862, 1.0, 0.0
      %v871 = vsel %vm863, 1.0, 0.0
      %v872 = vsel %vm864, 1.0, 0.0
      %v873 = vsel %vm865, 1.0, 0.0
      %v874 = vadd.f32 %v834, %v866
      %v875 = vadd.f32 %v835, %v867
      %v876 = vadd.f32 %v836, %v868
      %v877 = vadd.f32 %v837, %v869
      %v878 = vadd.f32 %v838, %v870
      %v879 = vadd.f32 %v839, %v871
      %v880 = vadd.f32 %v840, %v872
      %v881 = vadd.f32 %v841, %v873
      %v882 = vsub.f32 0.0, %v850
      %v883 = vsub.f32 0.0, %v851
      %v884 = vsub.f32 0.0, %v852
      %v885 = vsub.f32 0.0, %v853
      %v886 = vsub.f32 0.0, %v854
      %v887 = vsub.f32 0.0, %v855
      %v888 = vsub.f32 0.0, %v856
      %v889 = vsub.f32 0.0, %v857
      %v890 = vsel %vm858, %v882, %v850
      %v891 = vsel %vm859, %v883, %v851
      %v892 = vsel %vm860, %v884, %v852
      %v893 = vsel %vm861, %v885, %v853
      %v894 = vsel %vm862, %v886, %v854
      %v895 = vsel %vm863, %v887, %v855
      %v896 = vsel %vm864, %v888, %v856
      %v897 = vsel %vm865, %v889, %v857
      %v898 = vmul.f32 %v890, %v738
      %v899 = vmul.f32 %v891, %v739
      %v900 = vmul.f32 %v892, %v740
      %v901 = vmul.f32 %v893, %v741
      %v902 = vmul.f32 %v894, %v742
      %v903 = vmul.f32 %v895, %v743
      %v904 = vmul.f32 %v896, %v744
      %v905 = vmul.f32 %v897, %v745
      %v906 = vmul.f32 %v874, 2.0
      %v907 = vmul.f32 %v875, 2.0
      %v908 = vmul.f32 %v876, 2.0
      %v909 = vmul.f32 %v877, 2.0
      %v910 = vmul.f32 %v878, 2.0
      %v911 = vmul.f32 %v879, 2.0
      %v912 = vmul.f32 %v880, 2.0
      %v913 = vmul.f32 %v881, 2.0
      %v914 = vsub.f32 %v898, %v906
      %v915 = vsub.f32 %v899, %v907
      %v916 = vsub.f32 %v900, %v908
      %v917 = vsub.f32 %v901, %v909
      %v918 = vsub.f32 %v902, %v910
      %v919 = vsub.f32 %v903, %v911
      %v920 = vsub.f32 %v904, %v912
      %v921 = vsub.f32 %v905, %v913
      %v922 = vlaneseq
      %v923 = vand.u32 %v922, 127
      %v924 = vadd.s32 %v923, 128
      %v925 = vadd.s32 %v923, 256
      %v926 = vadd.s32 %v923, 384
      %v927 = vstv %s43
      %v928 = vadd.s32 %v927, %v923
      %v929 = vadd.s32 %v927, %v924
      %v930 = vadd.s32 %v927, %v925
      %v931 = vadd.s32 %v927, %v926
      %v932 = vld [vmem:[%s2] sm:$0xff]
      %v933 = vld [vmem:[%s2 + $0x8] sm:$0xff]
      %934 = vset.pattern.permute.xlu0 0
      %935 = vperm.xlu0 %934, %v932
      %v936 = vpop.permute.xlu0 %935
      %937 = vset.pattern.permute.xlu0 0
      %938 = vperm.xlu0 %937, %v933
      %v939 = vpop.permute.xlu0 %938
      %vm940 = vcmp.eq.s32.totalorder %v928, %v936
      %vm941 = vcmp.eq.s32.totalorder %v929, %v936
      %vm942 = vcmp.eq.s32.totalorder %v930, %v936
      %vm943 = vcmp.eq.s32.totalorder %v931, %v936
      %vm944 = vcmp.eq.s32.totalorder %v928, %v939
      %vm945 = vcmp.eq.s32.totalorder %v929, %v939
      %vm946 = vcmp.eq.s32.totalorder %v930, %v939
      %vm947 = vcmp.eq.s32.totalorder %v931, %v939
      %s948 = sld [smem:[#allocation3]]
      %v949 = vsub.f32 %v914, %v698
      %v950 = vsub.f32 %v915, %v699
      %v951 = vsub.f32 %v916, %v700
      %v952 = vsub.f32 %v917, %v701
      %v953 = vsub.f32 %v918, %v702
      %v954 = vsub.f32 %v919, %v703
      %v955 = vsub.f32 %v920, %v704
      %v956 = vsub.f32 %v921, %v705
      %v957 = vstv %s948
      %v958 = vmul.f32 %v949, %v957
      %v959 = vmul.f32 %v950, %v957
      %v960 = vmul.f32 %v951, %v957
      %v961 = vmul.f32 %v952, %v957
      %v962 = vmul.f32 %v953, %v957
      %v963 = vmul.f32 %v954, %v957
      %v964 = vmul.f32 %v955, %v957
      %v965 = vmul.f32 %v956, %v957
      %v966 = vadd.f32 %v958, %v698
      %v967 = vadd.f32 %v959, %v699
      %v968 = vadd.f32 %v960, %v700
      %v969 = vadd.f32 %v961, %v701
      %v970 = vadd.f32 %v962, %v702
      %v971 = vadd.f32 %v963, %v703
      %v972 = vadd.f32 %v964, %v704
      %v973 = vadd.f32 %v965, %v705
      %v974 = vsel %vm940, %v966, %v698
      %v975 = vsel %vm941, %v967, %v699
      %v976 = vsel %vm942, %v968, %v700
      %v977 = vsel %vm943, %v969, %v701
      %v978 = vsel %vm944, %v970, %v702
      %v979 = vsel %vm945, %v971, %v703
      %v980 = vsel %vm946, %v972, %v704
      %v981 = vsel %vm947, %v973, %v705
      %983 = vset.pattern.permute.xlu0 0
      %984 = vperm.xlu0 %983, %v634
      %v985 = vpop.permute.xlu0 %984
      %988 = vset.pattern.permute.xlu0 0
      %989 = vperm.xlu0 %988, %v635
      %v990 = vpop.permute.xlu0 %989
      %v992 = vmul.f32 %v974, %v985
      %v993 = vmul.f32 %v975, %v985
      %v994 = vmul.f32 %v976, %v985
      %v995 = vmul.f32 %v977, %v985
      %v996 = vmul.f32 %v978, %v990
      %v997 = vmul.f32 %v979, %v990
      %v998 = vmul.f32 %v980, %v990
      %v999 = vmul.f32 %v981, %v990
      %1000 = vst [vmem:[#allocation7] sm:$0xff] %v992
      %1001 = vst [vmem:[#allocation7 + $0x8] sm:$0xff] %v993
      %1002 = vst [vmem:[#allocation7 + $0x10] sm:$0xff] %v994
      %1003 = vst [vmem:[#allocation7 + $0x18] sm:$0xff] %v995
      %1004 = vst [vmem:[#allocation7 + $0x20] sm:$0xff] %v996
      %1005 = vst [vmem:[#allocation7 + $0x28] sm:$0xff] %v997
      %1006 = vst [vmem:[#allocation7 + $0x30] sm:$0xff] %v998
      %1007 = vst [vmem:[#allocation7 + $0x38] sm:$0xff] %v999
    $region41: #{tpu_custom_call.1} parent=1 // pred_fallthru
      _
    // Predicated region
    $region42: #{tpu_custom_call.1} parent=1 // pred_check
      _
    $region43: #{tpu_custom_call.1} parent=1 // pred_check_branch
      %1009 = sbr.rel (0) target = $region45
    $region44: #{tpu_custom_call.1} parent=1 // pred_region
      %s1011 = ssub.s32 1024, 1024
      %1012 = vsyncadd [#allocation6], %s1011
      %s1013 = sshll.u32 [#allocation7], 4
      %s1014 = int_to_ptr.vmem [resolvable:$true] %s1013
      %1019 = dma.vmem_to_hbm [thread:$0]  %s1014, 1024, %s7, [#allocation6], 512, 512, 32
    $region45: #{tpu_custom_call.1} parent=1 // pred_fallthru
      _
    // Predicated region
    $region46: #{tpu_custom_call.1} parent=1 // pred_check
      _
    $region47: #{tpu_custom_call.1} parent=1 // pred_check_branch
      %1021 = sbr.rel (0) target = $region49
    $region48: #{tpu_custom_call.1} parent=1 // pred_region
      %1022 = dma.done [#allocation6], 1024
    $region49: #{tpu_custom_call.1} parent=1 // pred_fallthru
      _
    %1023 = vsyncpa [#allocation5], 1
    %1024 = vsyncpa [#allocation6], 1

</llo_original>
